<compile_context>
chip_gen: v7x
topology: tpu7x:2x2x1
jax: 0.10.0
libtpu: 0.0.40
codegen_flags: <defaults>
</compile_context>

<pallas_src>
import functools

import jax
import jax.numpy as jnp
from jax import lax
from jax.experimental import pallas as pl
from jax.experimental.pallas import tpu as pltpu

_VMEM_LIMIT = 32 * 1024 * 1024


# ----------------------------------------------------------------------------
# In-kernel helpers (traced with static ints closed over via functools.partial)
# ----------------------------------------------------------------------------
def _conv_rows(x, w_ref, H):
    """3x3 conv (pad=1) over row-stacked, lane-packed images.

    x     : (R, G*W*Cin) bf16, rows = (image_group_in_tile, h), lanes = (g, w, ci)
    w_ref : (3, G*W*Cin, G*L) bf16 banded + block-diagonal weights, one band per dy tap
    returns (R, G*L) f32, lanes = (dw, g, co, wo)
    """
    R = x.shape[0]
    # Three back-to-back MXU pushes on the unshifted input (no VPU prep in between).
    c0 = jnp.dot(x, w_ref[0], preferred_element_type=jnp.float32)   # pairs with row h-1
    c1 = jnp.dot(x, w_ref[1], preferred_element_type=jnp.float32)   # pairs with row h
    c2 = jnp.dot(x, w_ref[2], preferred_element_type=jnp.float32)   # pairs with row h+1
    # Row halo: shift the f32 partials by +/-1 row (XLU roll) and zero the first/last row
    # of every image in the tile (also kills roll wraparound / cross-image leakage).
    row = lax.broadcasted_iota(jnp.int32, c1.shape, 0)
    up = jnp.where((row % H) == 0, 0.0, pltpu.roll(c0, 1, axis=0))
    dn = jnp.where((row % H) == (H - 1), 0.0, pltpu.roll(c2, R - 1, axis=0))
    return c1 + up + dn


def _relu_pool_rows(z, *, p, G, Lo):
    """ReLU + AvgPool(p x p). z: (R, G*p*Lo) f32 with lanes = (dw, g, co, wo)."""
    R = z.shape[0]
    GLo = G * Lo
    z = jnp.maximum(z, 0.0)
    # Width pooling: dw-major lane layout -> contiguous (128-lane-aligned) block adds.
    t = z[:, 0:GLo]
    for dw in range(1, p):
        t = t + z[:, dw * GLo:(dw + 1) * GLo]
    if p == 1:
        return t
    # Height pooling: tiny in-register pooling matmul built from iota once per tile
    # (never streamed from HBM).  Works across stacked images because H % p == 0.
    Ro = R // p
    rr = lax.broadcasted_iota(jnp.int32, (Ro, R), 1)
    oo = lax.broadcasted_iota(jnp.int32, (Ro, R), 0)
    prow = jnp.where(rr // p == oo, 1.0 / (p * p), 0.0).astype(jnp.float32)
    return jnp.dot(prow, t, preferred_element_type=jnp.float32)


def _rowsum8(a):
    """(R, C) f32 -> (8, C) partial sums whose column-sum equals a.sum(axis=0)."""
    R, C = a.shape
    pad = (-R) % 8
    if pad:
        a = jnp.concatenate([a, jnp.zeros((pad, C), a.dtype)], axis=0)
        R += pad
    part = a[0:8, :]
    for i in range(8, R, 8):                       # static, unrolled; 8-row aligned slices
        part = part + a[i:i + 8, :]
    return part


# ----------------------------------------------------------------------------
# Kernels
# ----------------------------------------------------------------------------
def _conv_stats_kernel(x_ref, w_ref, y_ref, s_ref, q_ref, *, H):
    """BN path pass 1: conv3x3 (bias dropped - it cancels through BN) + channel sums."""
    acc = _conv_rows(x_ref[...], w_ref, H)          # (R, G*L) f32
    y_ref[...] = acc.astype(y_ref.dtype)            # lane-dense bf16 intermediate
    s_ref[0] = _rowsum8(acc)                        # stats stay f32
    q_ref[0] = _rowsum8(acc * acc)


def _bn_relu_pool_kernel(y_ref, scale_ref, shift_ref, o_ref, *, p, G, Lo):
    """BN path pass 2: folded BN affine + ReLU + AvgPool on a batched row tile."""
    z = y_ref[...].astype(jnp.float32) * scale_ref[...] + shift_ref[...]
    o_ref[...] = _relu_pool_rows(z, p=p, G=G, Lo=Lo)


def _conv_relu_pool_kernel(x_ref, w_ref, b_ref, o_ref, *, H, p, G, Lo):
    """batch_norm=False path: fused conv3x3 + bias + ReLU + AvgPool, single launch."""
    acc = _conv_rows(x_ref[...], w_ref, H) + b_ref[...]
    o_ref[...] = _relu_pool_rows(acc, p=p, G=G, Lo=Lo)


# ----------------------------------------------------------------------------
# Tiling heuristic
# ----------------------------------------------------------------------------
def _pick_row_tile(num_groups, H, Ho, max_rows=512):
    """Row-groups (lane-packed image groups) per grid step.

    Prefer >=2 grid steps (v7x shards 'parallel' axes across its 2 TensorCores) while
    keeping each step's matmul M dimension large; when tiling (steps > 1) keep sublane
    extents aligned (bf16 input tile: 16 rows, f32 output tile: 8 rows).
    """
    cands = []
    for d in range(1, num_groups + 1):
        if num_groups % d:
            continue
        if d * H > max_rows:
            continue
        if num_groups // d > 1 and ((d * H) % 16 or (d * Ho) % 8):
            continue
        cands.append(d)
    if not cands:
        return num_groups
    multi = [d for d in cands if num_groups // d >= 2]
    return max(multi) if multi else max(cands)


# ----------------------------------------------------------------------------
# Wrapper: ConvBlock.forward
# ----------------------------------------------------------------------------
def conv_block_forward(x_nchw, w_hwio, bias, gamma, beta, *,
                       avg_pool_size, batch_norm, eps=1e-5):
    N, Cin, H, W = x_nchw.shape
    Cout = w_hwio.shape[-1]
    p = int(avg_pool_size) if avg_pool_size > 1 else 1
    assert H % p == 0 and W % p == 0
    Ho, Wo = H // p, W // p
    WC = W * Cin                 # input lanes per image   (lane = w*Cin + ci)
    Lo = Cout * Wo               # pooled lanes per image  (lane = co*Wo + wo)
    L = p * Lo                   # conv-out lanes per image

    # Lane-pack factor: put G images side by side in the lane axis so the MXU sees
    # K = G*WC and N = G*L and all loads/stores are lane-dense.
    G = 2 if (N % 2 == 0 and WC < 128) else 1
    NG = N // G                                      # row-groups
    NB = _pick_row_tile(NG, H, Ho)                   # row-groups per grid step
    steps = NG // NB

    # glue: NCHW -> (NG*H, G*WC) bf16; rows = (row_group, h), lanes = (g, w, ci).
    xt = jnp.transpose(x_nchw, (0, 2, 3, 1)).astype(jnp.bfloat16)       # (N, H, W, Cin)
    xt = xt.reshape(NG, G, H, WC)
    x_flat = jnp.transpose(xt, (0, 2, 1, 3)).reshape(NG * H, G * WC)

    # Banded weights: fold the 3 dx taps, the zero padding along W and the pooling-friendly
    # lane permutation into the weights; block-diagonal over the G lane-packed images.
    wi = jnp.arange(W)[:, None, None]
    dxs = jnp.arange(3)[None, :, None]
    wout = jnp.arange(W)[None, None, :]
    sel = (wi == wout + dxs - 1).astype(jnp.float32)                    # (W_in, 3, W_out)
    wband = jnp.einsum('ido,ydcf->yicof', sel, w_hwio.astype(jnp.float32))  # (3,W,Cin,Wout,Cout)
    wband = wband.reshape(3, WC, Wo, p, Cout)                           # w_out -> (wo, dw)
    wband = jnp.transpose(wband, (0, 1, 3, 4, 2))                       # (3, WC, dw, co, wo)
    eyeG = jnp.eye(G, dtype=jnp.float32)
    wbig = jnp.einsum('gh,ykdcw->ygkdhcw', eyeG, wband)                 # block-diag over images
    wbig = wbig.reshape(3, G * WC, G * L).astype(jnp.bfloat16)

    def tile_lanes(v):           # (Cout,) -> (1, G*L) in the (dw, g, co, wo) lane order
        return jnp.broadcast_to(v.astype(jnp.float32)[None, None, :, None],
                                (p, G, Cout, Wo)).reshape(1, G * L)

    common = dict(compiler_params=pltpu.CompilerParams(
        dimension_semantics=("parallel",),
        vmem_limit_bytes=_VMEM_LIMIT))

    x_spec = pl.BlockSpec((NB * H, G * WC), lambda s: (s, 0))
    w_spec = pl.BlockSpec((3, G * WC, G * L), lambda s: (0, 0, 0))
    vec_spec = pl.BlockSpec((1, G * L), lambda s: (0, 0))

    if not batch_norm:
        # Fused conv + bias + ReLU + AvgPool: no HBM intermediate, single kernel launch.
        out_pooled = pl.pallas_call(
            functools.partial(_conv_relu_pool_kernel, H=H, p=p, G=G, Lo=Lo),
            out_shape=jax.ShapeDtypeStruct((NG * Ho, G * Lo), jnp.float32),
            grid=(steps,),
            in_specs=[x_spec, w_spec, vec_spec],
            out_specs=pl.BlockSpec((NB * Ho, G * Lo), lambda s: (s, 0)),
            **common,
        )(x_flat, wbig, tile_lanes(bias))
    else:
        # Pass 1: conv (bias dropped; it cancels exactly through BN) + per-tile stats.
        conv_out, csum, csq = pl.pallas_call(
            functools.partial(_conv_stats_kernel, H=H),
            out_shape=(
                jax.ShapeDtypeStruct((NG * H, G * L), jnp.bfloat16),
                jax.ShapeDtypeStruct((steps, 8, G * L), jnp.float32),
                jax.ShapeDtypeStruct((steps, 8, G * L), jnp.float32),
            ),
            grid=(steps,),
            in_specs=[x_spec, w_spec],
            out_specs=(
                pl.BlockSpec((NB * H, G * L), lambda s: (s, 0)),
                pl.BlockSpec((1, 8, G * L), lambda s: (s, 0, 0)),
                pl.BlockSpec((1, 8, G * L), lambda s: (s, 0, 0)),
            ),
            **common,
        )(x_flat, wbig)

        # glue: tiny cross-batch reduction for training-mode BatchNorm2d (biased variance).
        total = float(N * H * W)
        ch_sum = jnp.sum(csum.reshape(steps * 8, p, G, Cout, Wo), axis=(0, 1, 2, 4))
        ch_sq = jnp.sum(csq.reshape(steps * 8, p, G, Cout, Wo), axis=(0, 1, 2, 4))
        mean = ch_sum / total
        var = jnp.maximum(ch_sq / total - mean * mean, 0.0)   # guard E[x^2]-E[x]^2 cancellation
        scale_c = gamma.astype(jnp.float32) / jnp.sqrt(var + eps)
        shift_c = beta.astype(jnp.float32) - mean * scale_c

        # Pass 2: folded BN affine + ReLU + AvgPool on the same batched row tiles.
        out_pooled = pl.pallas_call(
            functools.partial(_bn_relu_pool_kernel, p=p, G=G, Lo=Lo),
            out_shape=jax.ShapeDtypeStruct((NG * Ho, G * Lo), jnp.float32),
            grid=(steps,),
            in_specs=[pl.BlockSpec((NB * H, G * L), lambda s: (s, 0)),
                      vec_spec, vec_spec],
            out_specs=pl.BlockSpec((NB * Ho, G * Lo), lambda s: (s, 0)),
            **common,
        )(conv_out, tile_lanes(scale_c), tile_lanes(shift_c))

    # glue: (NG*Ho, G*Lo) with rows=(rg,ho), lanes=(g,co,wo) -> PyTorch NCHW
    out = out_pooled.reshape(NG, Ho, G, Cout, Wo)
    return jnp.transpose(out, (0, 2, 3, 1, 4)).reshape(N, Cout, Ho, Wo)


# ----------------------------------------------------------------------------
# Pure-JAX reference (NCHW, f32, mirrors the PyTorch module semantics)
# ----------------------------------------------------------------------------
def _reference_forward(x_nchw, w_hwio, bias, gamma, beta, pool, batch_norm, eps=1e-5):
    w_oihw = jnp.transpose(w_hwio, (3, 2, 0, 1))
    y = lax.conv_general_dilated(x_nchw, w_oihw, (1, 1), ((1, 1), (1, 1)),
                                 dimension_numbers=("NCHW", "OIHW", "NCHW"))
    y = y + bias[None, :, None, None]
    if batch_norm:
        mean = jnp.mean(y, axis=(0, 2, 3), keepdims=True)
        var = jnp.var(y, axis=(0, 2, 3), keepdims=True)            # biased, training mode
        y = (y - mean) / jnp.sqrt(var + eps) * gamma[None, :, None, None] \
            + beta[None, :, None, None]
    y = jnp.maximum(y, 0.0)
    if pool > 1:
        N, C, Hh, Ww = y.shape
        y = y.reshape(N, C, Hh // pool, pool, Ww // pool, pool).mean(axis=(3, 5))
    return y


if __name__ == "__main__":
    # conv_params = [input_channels=4, output_channels=8, avg_pool_size=2, batch_norm=True]
    N, Cin, H, W = 2, 4, 16, 16
    Cout, pool = 8, 2

    key = jax.random.PRNGKey(0)
    k1, k2, k3 = jax.random.split(key, 3)
    x = jax.random.normal(k1, (N, Cin, H, W), jnp.float32)
    w_hwio = jax.random.normal(k2, (3, 3, Cin, Cout), jnp.float32) * 0.2
    bias = jax.random.normal(k3, (Cout,), jnp.float32) * 0.1
    gamma = jnp.ones((Cout,), jnp.float32)    # nn.BatchNorm2d default init
    beta = jnp.zeros((Cout,), jnp.float32)

    ok = True
    for batch_norm in (True, False):          # exercises both the BN and the fused path
        out = conv_block_forward(x, w_hwio, bias, gamma, beta,
                                 avg_pool_size=pool, batch_norm=batch_norm)
        out = jax.block_until_ready(out)
        ref = _reference_forward(x, w_hwio, bias, gamma, beta, pool, batch_norm)
        assert out.shape == ref.shape, (out.shape, ref.shape)
        # Tolerance covers the bf16 MXU inputs and (BN path) the bf16 conv intermediate;
        # real layout/math bugs are O(0.1+).
        ok &= bool(jnp.allclose(out, ref, rtol=3e-2, atol=3e-2))
    assert ok, "mismatch vs JAX reference"
    print("KERNEL_OK")
</pallas_src>

<mosaic_0001>
module attributes {stable_mosaic.version = 11 : i64} {
  func.func @_conv_stats_kernel(%arg0: i32, %arg1: memref<16x128xbf16, #tpu.memory_space<vmem>>, %arg2: memref<3x128x256xbf16, #tpu.memory_space<vmem>>, %arg3: memref<16x256xbf16, #tpu.memory_space<vmem>>, %arg4: memref<1x8x256xf32, #tpu.memory_space<vmem>>, %arg5: memref<1x8x256xf32, #tpu.memory_space<vmem>>) attributes {dimension_semantics = [#tpu.dimension_semantics<parallel>], iteration_bounds = array<i64: 1>, scalar_prefetch = 0 : i64, scratch_operands = 0 : i64, tpu.core_type = #tpu.core_type<tc>, window_params = [{transform_indices = @transform_0, window_bounds = array<i64: 16, 128>}, {pipeline_mode = #tpu.pipeline_mode<synchronous>, transform_indices = @transform_1, window_bounds = array<i64: 3, 128, 256>}, {transform_indices = @transform_2, window_bounds = array<i64: 16, 256>}, {transform_indices = @transform_3, window_bounds = array<i64: 1, 8, 256>}, {transform_indices = @transform_4, window_bounds = array<i64: 1, 8, 256>}]} {
    %c0 = arith.constant 0 : index
    %c0_0 = arith.constant 0 : index
    %0 = vector.load %arg1[%c0, %c0_0] : memref<16x128xbf16, #tpu.memory_space<vmem>>, vector<16x128xbf16>
    %c0_1 = arith.constant 0 : index
    %c0_2 = arith.constant 0 : index
    %c0_3 = arith.constant 0 : index
    %1 = vector.load %arg2[%c0_1, %c0_2, %c0_3] : memref<3x128x256xbf16, #tpu.memory_space<vmem>>, vector<1x128x256xbf16>
    %2 = vector.shape_cast %1 : vector<1x128x256xbf16> to vector<128x256xbf16>
    %cst = arith.constant dense<0.000000e+00> : vector<16x256xf32>
    %3 = tpu.matmul %0, %2, %cst {dimension_numbers = #tpu.dot_dimension_numbers<[1], [0], [0], [1], [0, 0, 1, 1], [], []>} : vector<16x128xbf16>, vector<128x256xbf16>, vector<16x256xf32> -> vector<16x256xf32>
    %c1 = arith.constant 1 : index
    %c0_4 = arith.constant 0 : index
    %c0_5 = arith.constant 0 : index
    %4 = vector.load %arg2[%c1, %c0_4, %c0_5] : memref<3x128x256xbf16, #tpu.memory_space<vmem>>, vector<1x128x256xbf16>
    %5 = vector.shape_cast %4 : vector<1x128x256xbf16> to vector<128x256xbf16>
    %cst_6 = arith.constant dense<0.000000e+00> : vector<16x256xf32>
    %6 = tpu.matmul %0, %5, %cst_6 {dimension_numbers = #tpu.dot_dimension_numbers<[1], [0], [0], [1], [0, 0, 1, 1], [], []>} : vector<16x128xbf16>, vector<128x256xbf16>, vector<16x256xf32> -> vector<16x256xf32>
    %c2 = arith.constant 2 : index
    %c0_7 = arith.constant 0 : index
    %c0_8 = arith.constant 0 : index
    %7 = vector.load %arg2[%c2, %c0_7, %c0_8] : memref<3x128x256xbf16, #tpu.memory_space<vmem>>, vector<1x128x256xbf16>
    %8 = vector.shape_cast %7 : vector<1x128x256xbf16> to vector<128x256xbf16>
    %cst_9 = arith.constant dense<0.000000e+00> : vector<16x256xf32>
    %9 = tpu.matmul %0, %8, %cst_9 {dimension_numbers = #tpu.dot_dimension_numbers<[1], [0], [0], [1], [0, 0, 1, 1], [], []>} : vector<16x128xbf16>, vector<128x256xbf16>, vector<16x256xf32> -> vector<16x256xf32>
    %10 = tpu.iota {dimensions = array<i32: 0>} : vector<16x256xi32>
    %c16_i32 = arith.constant 16 : i32
    %c0_i32 = arith.constant 0 : i32
    %11 = arith.cmpi eq, %c16_i32, %c0_i32 : i32
    %c1_i32 = arith.constant 1 : i32
    %12 = arith.select %11, %c1_i32, %c16_i32 : i32
    %13 = vector.broadcast %12 : i32 to vector<16x256xi32>
    %14 = arith.remsi %10, %13 : vector<16x256xi32>
    %c0_i32_10 = arith.constant 0 : i32
    %15 = vector.broadcast %c0_i32_10 : i32 to vector<16x256xi32>
    %16 = arith.cmpi ne, %14, %15 : vector<16x256xi32>
    %c0_i32_11 = arith.constant 0 : i32
    %17 = vector.broadcast %c0_i32_11 : i32 to vector<16x256xi32>
    %18 = arith.cmpi slt, %14, %17 : vector<16x256xi32>
    %c0_i32_12 = arith.constant 0 : i32
    %19 = arith.cmpi slt, %12, %c0_i32_12 : i32
    %20 = vector.broadcast %19 : i1 to vector<16x256xi1>
    %21 = vector.broadcast %20 : vector<16x256xi1> to vector<16x256xi1>
    %22 = arith.xori %18, %21 : vector<16x256xi1>
    %23 = arith.andi %22, %16 : vector<16x256xi1>
    %24 = vector.broadcast %12 : i32 to vector<16x256xi32>
    %25 = arith.addi %14, %24 : vector<16x256xi32>
    %26 = arith.select %23, %25, %14 : vector<16x256xi1>, vector<16x256xi32>
    %c0_i32_13 = arith.constant 0 : i32
    %27 = vector.broadcast %c0_i32_13 : i32 to vector<16x256xi32>
    %28 = arith.cmpi eq, %26, %27 : vector<16x256xi32>
    %c1_i32_14 = arith.constant 1 : i32
    %29 = tpu.dynamic_rotate %3 by %c1_i32_14 dim 0 : vector<16x256xf32>, i32 -> vector<16x256xf32>
    %cst_15 = arith.constant 0.000000e+00 : f32
    %30 = vector.broadcast %cst_15 : f32 to vector<16x256xf32>
    %31 = arith.select %28, %30, %29 : vector<16x256xi1>, vector<16x256xf32>
    %c16_i32_16 = arith.constant 16 : i32
    %c0_i32_17 = arith.constant 0 : i32
    %32 = arith.cmpi eq, %c16_i32_16, %c0_i32_17 : i32
    %c1_i32_18 = arith.constant 1 : i32
    %33 = arith.select %32, %c1_i32_18, %c16_i32_16 : i32
    %34 = vector.broadcast %33 : i32 to vector<16x256xi32>
    %35 = arith.remsi %10, %34 : vector<16x256xi32>
    %c0_i32_19 = arith.constant 0 : i32
    %36 = vector.broadcast %c0_i32_19 : i32 to vector<16x256xi32>
    %37 = arith.cmpi ne, %35, %36 : vector<16x256xi32>
    %c0_i32_20 = arith.constant 0 : i32
    %38 = vector.broadcast %c0_i32_20 : i32 to vector<16x256xi32>
    %39 = arith.cmpi slt, %35, %38 : vector<16x256xi32>
    %c0_i32_21 = arith.constant 0 : i32
    %40 = arith.cmpi slt, %33, %c0_i32_21 : i32
    %41 = vector.broadcast %40 : i1 to vector<16x256xi1>
    %42 = vector.broadcast %41 : vector<16x256xi1> to vector<16x256xi1>
    %43 = arith.xori %39, %42 : vector<16x256xi1>
    %44 = arith.andi %43, %37 : vector<16x256xi1>
    %45 = vector.broadcast %33 : i32 to vector<16x256xi32>
    %46 = arith.addi %35, %45 : vector<16x256xi32>
    %47 = arith.select %44, %46, %35 : vector<16x256xi1>, vector<16x256xi32>
    %c15_i32 = arith.constant 15 : i32
    %48 = vector.broadcast %c15_i32 : i32 to vector<16x256xi32>
    %49 = arith.cmpi eq, %47, %48 : vector<16x256xi32>
    %c15_i32_22 = arith.constant 15 : i32
    %50 = tpu.dynamic_rotate %9 by %c15_i32_22 dim 0 : vector<16x256xf32>, i32 -> vector<16x256xf32>
    %cst_23 = arith.constant 0.000000e+00 : f32
    %51 = vector.broadcast %cst_23 : f32 to vector<16x256xf32>
    %52 = arith.select %49, %51, %50 : vector<16x256xi1>, vector<16x256xf32>
    %53 = arith.addf %6, %31 : vector<16x256xf32>
    %54 = arith.addf %53, %52 : vector<16x256xf32>
    %55 = arith.truncf %54 : vector<16x256xf32> to vector<16x256xbf16>
    %c0_24 = arith.constant 0 : index
    %c0_25 = arith.constant 0 : index
    %56 = vector.load %arg3[%c0_24, %c0_25] : memref<16x256xbf16, #tpu.memory_space<vmem>>, vector<16x256xbf16>
    tpu.vector_store %arg3[%c0_24, %c0_25], %55 {strides = array<i32>} : memref<16x256xbf16, #tpu.memory_space<vmem>>, vector<16x256xbf16>,
    %57 = vector.extract_strided_slice %54 {offsets = [0, 0], sizes = [8, 256], strides = [1, 1]} : vector<16x256xf32> to vector<8x256xf32>
    %58 = vector.extract_strided_slice %54 {offsets = [8, 0], sizes = [8, 256], strides = [1, 1]} : vector<16x256xf32> to vector<8x256xf32>
    %59 = arith.addf %57, %58 : vector<8x256xf32>
    %c0_26 = arith.constant 0 : index
    %c0_27 = arith.constant 0 : index
    %c0_28 = arith.constant 0 : index
    %60 = vector.load %arg4[%c0_26, %c0_27, %c0_28] : memref<1x8x256xf32, #tpu.memory_space<vmem>>, vector<1x8x256xf32>
    %61 = vector.shape_cast %60 : vector<1x8x256xf32> to vector<8x256xf32>
    %62 = vector.shape_cast %59 : vector<8x256xf32> to vector<1x8x256xf32>
    tpu.vector_store %arg4[%c0_26, %c0_27, %c0_28], %62 {strides = array<i32>} : memref<1x8x256xf32, #tpu.memory_space<vmem>>, vector<1x8x256xf32>,
    %63 = arith.mulf %54, %54 : vector<16x256xf32>
    %64 = vector.extract_strided_slice %63 {offsets = [0, 0], sizes = [8, 256], strides = [1, 1]} : vector<16x256xf32> to vector<8x256xf32>
    %65 = vector.extract_strided_slice %63 {offsets = [8, 0], sizes = [8, 256], strides = [1, 1]} : vector<16x256xf32> to vector<8x256xf32>
    %66 = arith.addf %64, %65 : vector<8x256xf32>
    %c0_29 = arith.constant 0 : index
    %c0_30 = arith.constant 0 : index
    %c0_31 = arith.constant 0 : index
    %67 = vector.load %arg5[%c0_29, %c0_30, %c0_31] : memref<1x8x256xf32, #tpu.memory_space<vmem>>, vector<1x8x256xf32>
    %68 = vector.shape_cast %67 : vector<1x8x256xf32> to vector<8x256xf32>
    %69 = vector.shape_cast %66 : vector<8x256xf32> to vector<1x8x256xf32>
    tpu.vector_store %arg5[%c0_29, %c0_30, %c0_31], %69 {strides = array<i32>} : memref<1x8x256xf32, #tpu.memory_space<vmem>>, vector<1x8x256xf32>,
    return
  }
  func.func @transform_0(%arg0: i32) -> (i32, i32) {
    %c0_i32 = arith.constant 0 : i32
    %c0_i32_0 = arith.constant 0 : i32
    return %arg0, %c0_i32 : i32, i32
  }
  func.func @transform_1(%arg0: i32) -> (i32, i32, i32) {
    %c0_i32 = arith.constant 0 : i32
    %c0_i32_0 = arith.constant 0 : i32
    %c0_i32_1 = arith.constant 0 : i32
    %c0_i32_2 = arith.constant 0 : i32
    return %c0_i32, %c0_i32_0, %c0_i32_1 : i32, i32, i32
  }
  func.func @transform_2(%arg0: i32) -> (i32, i32) {
    %c0_i32 = arith.constant 0 : i32
    %c0_i32_0 = arith.constant 0 : i32
    return %arg0, %c0_i32 : i32, i32
  }
  func.func @transform_3(%arg0: i32) -> (i32, i32, i32) {
    %c0_i32 = arith.constant 0 : i32
    %c0_i32_0 = arith.constant 0 : i32
    %c0_i32_1 = arith.constant 0 : i32
    return %arg0, %c0_i32, %c0_i32_0 : i32, i32, i32
  }
  func.func @transform_4(%arg0: i32) -> (i32, i32, i32) {
    %c0_i32 = arith.constant 0 : i32
    %c0_i32_0 = arith.constant 0 : i32
    %c0_i32_1 = arith.constant 0 : i32
    return %arg0, %c0_i32, %c0_i32_0 : i32, i32, i32
  }
}

</mosaic_0001>

<llo_original>
// kernel: tpu_custom_call.1
$region0: #{tpu_custom_call.1}
  #allocation0 [shape = 'u32[]', space=smem, size = 0x4, offset = 0x4, fixed_abs, tag = 'smem constant byte address 0x4 - core index']
  #allocation1 [shape = 'u32[144,128]{1,0:T(1,128)}', space=vmem, size = 0x12000, scoped, tag = 'internal scratch']
  %s0 = inlined_call_operand.hbm [shape: bf16[16,128], index: 0, kind: input, shape index: {}]
  %s1 = inlined_call_operand.hbm [shape: bf16[3,128,256], index: 1, kind: input, shape index: {}]
  %s2 = inlined_call_operand.hbm [shape: bf16[16,256], index: 2, kind: output, shape index: {0}]
  %s3 = inlined_call_operand.hbm [shape: f32[1,8,256], index: 3, kind: output, shape index: {1}]
  %s4 = inlined_call_operand.hbm [shape: f32[1,8,256], index: 4, kind: output, shape index: {2}]
  %5 = xla_tuple %s2, %s3, %s4
  %s6 = sld [smem:[#allocation0]]
  $region42: #{tpu_custom_call.1} parent=0
    _
  %s8 = ssub.s32 1, %s6
  %s9 = scalar_select 0, %s8, %s6
  $region1: #{tpu_custom_call.1} parent=0
    #allocation2 [shape = 'u8[4096]{0}', space=vmem, size = 0x1000, scoped, tag = 'input window, operand 0, single buffered']
    #allocation3 [shape = 's32[1]{0}', space=sflag, size = 0x4, scoped, tag = 'scoped memory for tpu_custom_call.1']
    #allocation4 [shape = 's32[1]{0}', space=sflag, size = 0x4, scoped, tag = 'scoped memory for tpu_custom_call.1']
    #allocation5 [shape = 'u8[196608]{0}', space=vmem, size = 0x30000, scoped, tag = 'input window, operand 1, single buffered']
    #allocation6 [shape = 's32[1]{0}', space=sflag, size = 0x4, scoped, tag = 'scoped memory for tpu_custom_call.1']
    #allocation7 [shape = 'u8[8192]{0}', space=vmem, size = 0x2000, scoped, tag = 'output window, operand 0, single buffered']
    #allocation8 [shape = 'u8[8192]{0}', space=vmem, size = 0x2000, scoped, tag = 'output window, operand 1, single buffered']
    #allocation9 [shape = 's32[1]{0}', space=sflag, size = 0x4, scoped, tag = 'scoped memory for tpu_custom_call.1']
    #allocation10 [shape = 'u8[8192]{0}', space=vmem, size = 0x2000, scoped, tag = 'output window, operand 2, single buffered']
    %10 = vsyncpa [#allocation3], 0
    %11 = vsyncpa [#allocation6], 0
    %12 = vsyncpa [#allocation4], 0
    %13 = vsyncpa [#allocation9], 0
    // Predicated region
    $region2: #{tpu_custom_call.1} parent=1 // pred_check
      _
    $region3: #{tpu_custom_call.1} parent=1 // pred_check_branch
      %15 = sbr.rel (0) target = $region5
    $region4: #{tpu_custom_call.1} parent=1 // pred_region
      %s17 = ssub.s32 128, 128
      %18 = vsyncadd [#allocation3], %s17
      %s19 = sshll.u32 [#allocation2], 4
      %s20 = int_to_ptr.vmem [resolvable:$true] %s19
      %25 = dma.hbm_to_vmem [thread:$0]  %s0, 128, %s20, [#allocation3], 64, 64, 4
    $region5: #{tpu_custom_call.1} parent=1 // pred_fallthru
      _
    // Predicated region
    $region6: #{tpu_custom_call.1} parent=1 // pred_check
      _
    $region7: #{tpu_custom_call.1} parent=1 // pred_check_branch
      %27 = sbr.rel (0) target = $region9
    $region8: #{tpu_custom_call.1} parent=1 // pred_region
      %s29 = ssub.s32 6144, 6144
      %30 = vsyncadd [#allocation6], %s29
      %s31 = sshll.u32 [#allocation5], 4
      %s32 = int_to_ptr.vmem [resolvable:$true] %s31
      %37 = dma.hbm_to_vmem [thread:$0]  %s1, 6144, %s32, [#allocation6], 128, 128, 8
    $region9: #{tpu_custom_call.1} parent=1 // pred_fallthru
      _
    // Predicated region
    $region10: #{tpu_custom_call.1} parent=1 // pred_check
      _
    $region11: #{tpu_custom_call.1} parent=1 // pred_check_branch
      %39 = sbr.rel (0) target = $region13
    $region12: #{tpu_custom_call.1} parent=1 // pred_region
      %40 = dma.done [#allocation3], 128
    $region13: #{tpu_custom_call.1} parent=1 // pred_fallthru
      _
    // Predicated region
    $region14: #{tpu_custom_call.1} parent=1 // pred_check
      _
    $region15: #{tpu_custom_call.1} parent=1 // pred_check_branch
      %42 = sbr.rel (0) target = $region17
    $region16: #{tpu_custom_call.1} parent=1 // pred_region
      %43 = dma.done [#allocation6], 6144
    $region17: #{tpu_custom_call.1} parent=1 // pred_fallthru
      _
    %v45 = vld [vmem:[#allocation2] sm:$0xf]
    %v46 = vld [vmem:[#allocation2 + $0x4] sm:$0xf]
    %v47 = vld [vmem:[#allocation5] sm:$0xff]
    %v48 = vld [vmem:[#allocation5 + $0x8] sm:$0xff]
    %v49 = vld [vmem:[#allocation5 + $0x10] sm:$0xff]
    %v50 = vld [vmem:[#allocation5 + $0x18] sm:$0xff]
    %v51 = vld [vmem:[#allocation5 + $0x20] sm:$0xff]
    %v52 = vld [vmem:[#allocation5 + $0x28] sm:$0xff]
    %v53 = vld [vmem:[#allocation5 + $0x30] sm:$0xff]
    %v54 = vld [vmem:[#allocation5 + $0x38] sm:$0xff]
    %v55 = vld [vmem:[#allocation5 + $0x40] sm:$0xff]
    %v56 = vld [vmem:[#allocation5 + $0x48] sm:$0xff]
    %v57 = vld [vmem:[#allocation5 + $0x50] sm:$0xff]
    %v58 = vld [vmem:[#allocation5 + $0x58] sm:$0xff]
    %v59 = vld [vmem:[#allocation5 + $0x60] sm:$0xff]
    %v60 = vld [vmem:[#allocation5 + $0x68] sm:$0xff]
    %v61 = vld [vmem:[#allocation5 + $0x70] sm:$0xff]
    %v62 = vld [vmem:[#allocation5 + $0x78] sm:$0xff]
    %v65 = vunpack.c.l.b16 %v45
    %v66 = vunpack.c.l.b16 %v46
    %v67 = vpack.c.b16 %v66, %v65
    %v85 = vunpack.c.l.b16 %v47
    %v86 = vunpack.c.h.b16 %v47
    %v87 = vunpack.c.l.b16 %v48
    %v88 = vunpack.c.h.b16 %v48
    %v89 = vunpack.c.l.b16 %v49
    %v90 = vunpack.c.h.b16 %v49
    %v91 = vunpack.c.l.b16 %v50
    %v92 = vunpack.c.h.b16 %v50
    %v93 = vunpack.c.l.b16 %v51
    %v94 = vunpack.c.h.b16 %v51
    %v95 = vunpack.c.l.b16 %v52
    %v96 = vunpack.c.h.b16 %v52
    %v97 = vunpack.c.l.b16 %v53
    %v98 = vunpack.c.h.b16 %v53
    %v99 = vunpack.c.l.b16 %v54
    %v100 = vunpack.c.h.b16 %v54
    %v101 = vunpack.c.l.b16 %v55
    %v102 = vunpack.c.h.b16 %v55
    %v103 = vunpack.c.l.b16 %v56
    %v104 = vunpack.c.h.b16 %v56
    %v105 = vunpack.c.l.b16 %v57
    %v106 = vunpack.c.h.b16 %v57
    %v107 = vunpack.c.l.b16 %v58
    %v108 = vunpack.c.h.b16 %v58
    %v109 = vunpack.c.l.b16 %v59
    %v110 = vunpack.c.h.b16 %v59
    %v111 = vunpack.c.l.b16 %v60
    %v112 = vunpack.c.h.b16 %v60
    %v113 = vunpack.c.l.b16 %v61
    %v114 = vunpack.c.h.b16 %v61
    %v115 = vunpack.c.l.b16 %v62
    %v116 = vunpack.c.h.b16 %v62
    %v117 = vpack.c.b16 %v87, %v85
    %v118 = vpack.c.b16 %v88, %v86
    %v119 = vpack.c.b16 %v91, %v89
    %v120 = vpack.c.b16 %v92, %v90
    %v121 = vpack.c.b16 %v95, %v93
    %v122 = vpack.c.b16 %v96, %v94
    %v123 = vpack.c.b16 %v99, %v97
    %v124 = vpack.c.b16 %v100, %v98
    %v125 = vpack.c.b16 %v103, %v101
    %v126 = vpack.c.b16 %v104, %v102
    %v127 = vpack.c.b16 %v107, %v105
    %v128 = vpack.c.b16 %v108, %v106
    %v129 = vpack.c.b16 %v111, %v109
    %v130 = vpack.c.b16 %v112, %v110
    %v131 = vpack.c.b16 %v115, %v113
    %v132 = vpack.c.b16 %v116, %v114
    %149 = vmatprep.subr.bf16.mxu0 %v118
    %150 = vmatpush1.bf16.msra.mxu0 %v117
    %151 = vmatprep.subr.bf16.mxu0 %v120
    %152 = vmatpush1.bf16.msra.mxu0 %v119
    %153 = vmatprep.subr.bf16.mxu0 %v122
    %154 = vmatpush1.bf16.msra.mxu0 %v121
    %155 = vmatprep.subr.bf16.mxu0 %v124
    %156 = vmatpush1.bf16.msra.mxu0 %v123
    %157 = vmatprep.subr.bf16.mxu0 %v126
    %158 = vmatpush1.bf16.msra.mxu0 %v125
    %159 = vmatprep.subr.bf16.mxu0 %v128
    %160 = vmatpush1.bf16.msra.mxu0 %v127
    %161 = vmatprep.subr.bf16.mxu0 %v130
    %162 = vmatpush1.bf16.msra.mxu0 %v129
    %163 = vmatprep.subr.bf16.mxu0 %v132
    %164 = vmatpush1.bf16.msra.mxu0 %v131
    %165 = vmatprep.subr.bf16.mxu0 0
    %166 = vmatpush1.bf16.msra.mxu0 0
    %167 = vmatprep.subr.bf16.mxu0 0
    %168 = vmatpush1.bf16.msra.mxu0 0
    %169 = vmatprep.subr.bf16.mxu0 0
    %170 = vmatpush1.bf16.msra.mxu0 0
    %171 = vmatprep.subr.bf16.mxu0 0
    %172 = vmatpush1.bf16.msra.mxu0 0
    %173 = vmatprep.subr.bf16.mxu0 0
    %174 = vmatpush1.bf16.msra.mxu0 0
    %175 = vmatprep.subr.bf16.mxu0 0
    %176 = vmatpush1.bf16.msra.mxu0 0
    %177 = vmatprep.subr.bf16.mxu0 0
    %178 = vmatpush1.bf16.msra.mxu0 0
    %179 = vmatprep.subr.bf16.mxu0 0
    %180 = vmatpush1.bf16.msra.mxu0 0
    %181 = vmatprep.mubr.bf16.mxu0 0
    %182 = vmatmul.mubr.bf16.gmra.mrb[0].mxu0 %v67
    %v183 = vpop.f32.mrb[0].mxu0
    %v184 = vadd.f32 0.0, %v183
    %v185 = vpop.f32.mrb[0].mxu0
    %v186 = vadd.f32 0.0, %v185
    %v187 = vpop.f32.mrb[0].mxu0
    %v188 = vadd.f32 0.0, %v187
    %v189 = vpop.f32.mrb[0].mxu0
    %v190 = vadd.f32 0.0, %v189
    %191 = vdwg.mxu0
    %s192 = scalar_lea.vmem [#allocation5], 128
    %v193 = vld [vmem:[%s192] sm:$0xff]
    %v194 = vld [vmem:[%s192 + $0x8] sm:$0xff]
    %v195 = vld [vmem:[%s192 + $0x10] sm:$0xff]
    %v196 = vld [vmem:[%s192 + $0x18] sm:$0xff]
    %v197 = vld [vmem:[%s192 + $0x20] sm:$0xff]
    %v198 = vld [vmem:[%s192 + $0x28] sm:$0xff]
    %v199 = vld [vmem:[%s192 + $0x30] sm:$0xff]
    %v200 = vld [vmem:[%s192 + $0x38] sm:$0xff]
    %v201 = vld [vmem:[%s192 + $0x40] sm:$0xff]
    %v202 = vld [vmem:[%s192 + $0x48] sm:$0xff]
    %v203 = vld [vmem:[%s192 + $0x50] sm:$0xff]
    %v204 = vld [vmem:[%s192 + $0x58] sm:$0xff]
    %v205 = vld [vmem:[%s192 + $0x60] sm:$0xff]
    %v206 = vld [vmem:[%s192 + $0x68] sm:$0xff]
    %v207 = vld [vmem:[%s192 + $0x70] sm:$0xff]
    %v208 = vld [vmem:[%s192 + $0x78] sm:$0xff]
    %s209 = scalar_lea.vmem [#allocation5], 256
    %v210 = vld [vmem:[%s209] sm:$0xff]
    %v211 = vld [vmem:[%s209 + $0x8] sm:$0xff]
    %v212 = vld [vmem:[%s209 + $0x10] sm:$0xff]
    %v213 = vld [vmem:[%s209 + $0x18] sm:$0xff]
    %v214 = vld [vmem:[%s209 + $0x20] sm:$0xff]
    %v215 = vld [vmem:[%s209 + $0x28] sm:$0xff]
    %v216 = vld [vmem:[%s209 + $0x30] sm:$0xff]
    %v217 = vld [vmem:[%s209 + $0x38] sm:$0xff]
    %v218 = vld [vmem:[%s209 + $0x40] sm:$0xff]
    %v219 = vld [vmem:[%s209 + $0x48] sm:$0xff]
    %v220 = vld [vmem:[%s209 + $0x50] sm:$0xff]
    %v221 = vld [vmem:[%s209 + $0x58] sm:$0xff]
    %v222 = vld [vmem:[%s209 + $0x60] sm:$0xff]
    %v223 = vld [vmem:[%s209 + $0x68] sm:$0xff]
    %v224 = vld [vmem:[%s209 + $0x70] sm:$0xff]
    %v225 = vld [vmem:[%s209 + $0x78] sm:$0xff]
    %v242 = vunpack.c.l.b16 %v210
    %v243 = vunpack.c.h.b16 %v210
    %v244 = vunpack.c.l.b16 %v211
    %v245 = vunpack.c.h.b16 %v211
    %v246 = vunpack.c.l.b16 %v212
    %v247 = vunpack.c.h.b16 %v212
    %v248 = vunpack.c.l.b16 %v213
    %v249 = vunpack.c.h.b16 %v213
    %v250 = vunpack.c.l.b16 %v214
    %v251 = vunpack.c.h.b16 %v214
    %v252 = vunpack.c.l.b16 %v215
    %v253 = vunpack.c.h.b16 %v215
    %v254 = vunpack.c.l.b16 %v216
    %v255 = vunpack.c.h.b16 %v216
    %v256 = vunpack.c.l.b16 %v217
    %v257 = vunpack.c.h.b16 %v217
    %v258 = vunpack.c.l.b16 %v218
    %v259 = vunpack.c.h.b16 %v218
    %v260 = vunpack.c.l.b16 %v219
    %v261 = vunpack.c.h.b16 %v219
    %v262 = vunpack.c.l.b16 %v220
    %v263 = vunpack.c.h.b16 %v220
    %v264 = vunpack.c.l.b16 %v221
    %v265 = vunpack.c.h.b16 %v221
    %v266 = vunpack.c.l.b16 %v222
    %v267 = vunpack.c.h.b16 %v222
    %v268 = vunpack.c.l.b16 %v223
    %v269 = vunpack.c.h.b16 %v223
    %v270 = vunpack.c.l.b16 %v224
    %v271 = vunpack.c.h.b16 %v224
    %v272 = vunpack.c.l.b16 %v225
    %v273 = vunpack.c.h.b16 %v225
    %v274 = vpack.c.b16 %v244, %v242
    %v275 = vpack.c.b16 %v245, %v243
    %v276 = vpack.c.b16 %v248, %v246
    %v277 = vpack.c.b16 %v249, %v247
    %v278 = vpack.c.b16 %v252, %v250
    %v279 = vpack.c.b16 %v253, %v251
    %v280 = vpack.c.b16 %v256, %v254
    %v281 = vpack.c.b16 %v257, %v255
    %v282 = vpack.c.b16 %v260, %v258
    %v283 = vpack.c.b16 %v261, %v259
    %v284 = vpack.c.b16 %v264, %v262
    %v285 = vpack.c.b16 %v265, %v263
    %v286 = vpack.c.b16 %v268, %v266
    %v287 = vpack.c.b16 %v269, %v267
    %v288 = vpack.c.b16 %v272, %v270
    %v289 = vpack.c.b16 %v273, %v271
    %306 = vmatprep.subr.bf16.mxu0 %v275
    %307 = vmatpush1.bf16.msra.mxu0 %v274
    %308 = vmatprep.subr.bf16.mxu0 %v277
    %309 = vmatpush1.bf16.msra.mxu0 %v276
    %310 = vmatprep.subr.bf16.mxu0 %v279
    %311 = vmatpush1.bf16.msra.mxu0 %v278
    %312 = vmatprep.subr.bf16.mxu0 %v281
    %313 = vmatpush1.bf16.msra.mxu0 %v280
    %314 = vmatprep.subr.bf16.mxu0 %v283
    %315 = vmatpush1.bf16.msra.mxu0 %v282
    %316 = vmatprep.subr.bf16.mxu0 %v285
    %317 = vmatpush1.bf16.msra.mxu0 %v284
    %318 = vmatprep.subr.bf16.mxu0 %v287
    %319 = vmatpush1.bf16.msra.mxu0 %v286
    %320 = vmatprep.subr.bf16.mxu0 %v289
    %321 = vmatpush1.bf16.msra.mxu0 %v288
    %322 = vmatprep.subr.bf16.mxu0 0
    %323 = vmatpush1.bf16.msra.mxu0 0
    %324 = vmatprep.subr.bf16.mxu0 0
    %325 = vmatpush1.bf16.msra.mxu0 0
    %326 = vmatprep.subr.bf16.mxu0 0
    %327 = vmatpush1.bf16.msra.mxu0 0
    %328 = vmatprep.subr.bf16.mxu0 0
    %329 = vmatpush1.bf16.msra.mxu0 0
    %330 = vmatprep.subr.bf16.mxu0 0
    %331 = vmatpush1.bf16.msra.mxu0 0
    %332 = vmatprep.subr.bf16.mxu0 0
    %333 = vmatpush1.bf16.msra.mxu0 0
    %334 = vmatprep.subr.bf16.mxu0 0
    %335 = vmatpush1.bf16.msra.mxu0 0
    %336 = vmatprep.subr.bf16.mxu0 0
    %337 = vmatpush1.bf16.msra.mxu0 0
    %338 = vmatprep.mubr.bf16.mxu0 0
    %339 = vmatmul.mubr.bf16.gmra.mrb[0].mxu0 %v67
    %v340 = vpop.f32.mrb[0].mxu0
    %v341 = vadd.f32 0.0, %v340
    %v342 = vpop.f32.mrb[0].mxu0
    %v343 = vadd.f32 0.0, %v342
    %v344 = vpop.f32.mrb[0].mxu0
    %v345 = vadd.f32 0.0, %v344
    %v346 = vpop.f32.mrb[0].mxu0
    %v347 = vadd.f32 0.0, %v346
    %348 = vdwg.mxu0
    %v349 = vlaneseq
    %v350 = vshrl.u32 %v349, 7
    %v351 = vadd.s32 %v350, 8
    %vm352 = vcmp.lt.s32.totalorder %v350, 0
    %v353 = vsub.s32 0, %v350
    %v354 = vsel %vm352, %v353, %v350
    %v355 = vshrl.u32 %v354, 4
    %v356 = vand.u32 %v354, 15
    %v357 = vsub.s32 0, %v356
    %v358 = vsel %vm352, %v357, %v356
    %vm359 = vcmp.lt.s32.totalorder %v351, 0
    %v360 = vsub.s32 0, %v351
    %v361 = vsel %vm359, %v360, %v351
    %v362 = vshrl.u32 %v361, 4
    %v363 = vand.u32 %v361, 15
    %v364 = vsub.s32 0, %v363
    %v365 = vsel %vm359, %v364, %v363
    %vm366 = vcmp.ne.s32.totalorder %v358, 0
    %vm367 = vcmp.ne.s32.totalorder %v365, 0
    %vm368 = vcmp.lt.s32.totalorder %v358, 0
    %vm369 = vcmp.lt.s32.totalorder %v365, 0
    %vm370 = vmand %vm368, %vm366
    %vm371 = vmand %vm369, %vm367
    %v372 = vadd.s32 %v358, 16
    %v373 = vadd.s32 %v365, 16
    %v374 = vsel %vm370, %v372, %v358
    %v375 = vsel %vm371, %v373, %v365
    %vm376 = vcmp.eq.s32.totalorder %v374, 0
    %vm377 = vcmp.eq.s32.totalorder %v375, 0
    %v378 = vrot.slane %v184, 7
    %v379 = vrot.slane %v186, 7
    %v380 = vrot.slane %v188, 7
    %v381 = vrot.slane %v190, 7
    %vm382 = vcmp.lt.s32.totalorder %v350, 1
    %v383 = vsel %vm382, %v378, %v380
    %v384 = vsel %vm382, %v379, %v381
    %v385 = vsel %vm382, %v380, %v378
    %v386 = vsel %vm382, %v381, %v379
    %v387 = vsel %vm376, 0.0, %v385
    %v388 = vsel %vm376, 0.0, %v386
    %v389 = vsel %vm377, 0.0, %v383
    %v390 = vsel %vm377, 0.0, %v384
    %vm391 = vcmp.eq.s32.totalorder %v374, 15
    %vm392 = vcmp.eq.s32.totalorder %v375, 15
    %v393 = vrot.slane %v341, 1
    %v394 = vrot.slane %v343, 1
    %v395 = vrot.slane %v345, 1
    %v396 = vrot.slane %v347, 1
    %vm397 = vcmp.lt.s32.totalorder %v350, 7
    %v398 = vsel %vm397, %v393, %v395
    %v399 = vsel %vm397, %v394, %v396
    %v400 = vsel %vm397, %v395, %v393
    %v401 = vsel %vm397, %v396, %v394
    %v402 = vsel %vm391, 0.0, %v398
    %v403 = vsel %vm391, 0.0, %v399
    %v404 = vsel %vm392, 0.0, %v400
    %v405 = vsel %vm392, 0.0, %v401
    %v422 = vunpack.c.l.b16 %v193
    %v423 = vunpack.c.h.b16 %v193
    %v424 = vunpack.c.l.b16 %v194
    %v425 = vunpack.c.h.b16 %v194
    %v426 = vunpack.c.l.b16 %v195
    %v427 = vunpack.c.h.b16 %v195
    %v428 = vunpack.c.l.b16 %v196
    %v429 = vunpack.c.h.b16 %v196
    %v430 = vunpack.c.l.b16 %v197
    %v431 = vunpack.c.h.b16 %v197
    %v432 = vunpack.c.l.b16 %v198
    %v433 = vunpack.c.h.b16 %v198
    %v434 = vunpack.c.l.b16 %v199
    %v435 = vunpack.c.h.b16 %v199
    %v436 = vunpack.c.l.b16 %v200
    %v437 = vunpack.c.h.b16 %v200
    %v438 = vunpack.c.l.b16 %v201
    %v439 = vunpack.c.h.b16 %v201
    %v440 = vunpack.c.l.b16 %v202
    %v441 = vunpack.c.h.b16 %v202
    %v442 = vunpack.c.l.b16 %v203
    %v443 = vunpack.c.h.b16 %v203
    %v444 = vunpack.c.l.b16 %v204
    %v445 = vunpack.c.h.b16 %v204
    %v446 = vunpack.c.l.b16 %v205
    %v447 = vunpack.c.h.b16 %v205
    %v448 = vunpack.c.l.b16 %v206
    %v449 = vunpack.c.h.b16 %v206
    %v450 = vunpack.c.l.b16 %v207
    %v451 = vunpack.c.h.b16 %v207
    %v452 = vunpack.c.l.b16 %v208
    %v453 = vunpack.c.h.b16 %v208
    %v454 = vpack.c.b16 %v424, %v422
    %v455 = vpack.c.b16 %v425, %v423
    %v456 = vpack.c.b16 %v428, %v426
    %v457 = vpack.c.b16 %v429, %v427
    %v458 = vpack.c.b16 %v432, %v430
    %v459 = vpack.c.b16 %v433, %v431
    %v460 = vpack.c.b16 %v436, %v434
    %v461 = vpack.c.b16 %v437, %v435
    %v462 = vpack.c.b16 %v440, %v438
    %v463 = vpack.c.b16 %v441, %v439
    %v464 = vpack.c.b16 %v444, %v442
    %v465 = vpack.c.b16 %v445, %v443
    %v466 = vpack.c.b16 %v448, %v446
    %v467 = vpack.c.b16 %v449, %v447
    %v468 = vpack.c.b16 %v452, %v450
    %v469 = vpack.c.b16 %v453, %v451
    %486 = vmatprep.subr.bf16.mxu0 %v455
    %487 = vmatpush1.bf16.msra.mxu0 %v454
    %488 = vmatprep.subr.bf16.mxu0 %v457
    %489 = vmatpush1.bf16.msra.mxu0 %v456
    %490 = vmatprep.subr.bf16.mxu0 %v459
    %491 = vmatpush1.bf16.msra.mxu0 %v458
    %492 = vmatprep.subr.bf16.mxu0 %v461
    %493 = vmatpush1.bf16.msra.mxu0 %v460
    %494 = vmatprep.subr.bf16.mxu0 %v463
    %495 = vmatpush1.bf16.msra.mxu0 %v462
    %496 = vmatprep.subr.bf16.mxu0 %v465
    %497 = vmatpush1.bf16.msra.mxu0 %v464
    %498 = vmatprep.subr.bf16.mxu0 %v467
    %499 = vmatpush1.bf16.msra.mxu0 %v466
    %500 = vmatprep.subr.bf16.mxu0 %v469
    %501 = vmatpush1.bf16.msra.mxu0 %v468
    %502 = vmatprep.subr.bf16.mxu0 0
    %503 = vmatpush1.bf16.msra.mxu0 0
    %504 = vmatprep.subr.bf16.mxu0 0
    %505 = vmatpush1.bf16.msra.mxu0 0
    %506 = vmatprep.subr.bf16.mxu0 0
    %507 = vmatpush1.bf16.msra.mxu0 0
    %508 = vmatprep.subr.bf16.mxu0 0
    %509 = vmatpush1.bf16.msra.mxu0 0
    %510 = vmatprep.subr.bf16.mxu0 0
    %511 = vmatpush1.bf16.msra.mxu0 0
    %512 = vmatprep.subr.bf16.mxu0 0
    %513 = vmatpush1.bf16.msra.mxu0 0
    %514 = vmatprep.subr.bf16.mxu0 0
    %515 = vmatpush1.bf16.msra.mxu0 0
    %516 = vmatprep.subr.bf16.mxu0 0
    %517 = vmatpush1.bf16.msra.mxu0 0
    %518 = vmatprep.mubr.bf16.mxu0 0
    %519 = vmatmul.mubr.bf16.gmra.mrb[0].mxu0 %v67
    %v520 = vpop.f32.mrb[0].mxu0
    %v521 = vadd.f32 %v387, %v520
    %v522 = vpop.f32.mrb[0].mxu0
    %v523 = vadd.f32 %v388, %v522
    %v524 = vpop.f32.mrb[0].mxu0
    %v525 = vadd.f32 %v389, %v524
    %v526 = vpop.f32.mrb[0].mxu0
    %v527 = vadd.f32 %v390, %v526
    %528 = vdwg.mxu0
    %v529 = vadd.f32 %v521, %v402
    %v530 = vadd.f32 %v523, %v403
    %v531 = vadd.f32 %v525, %v404
    %v532 = vadd.f32 %v527, %v405
    %v533 = vpack.c.bf16 %v531, %v529
    %v534 = vpack.c.bf16 %v532, %v530
    %v537 = vunpack.c.l.b16 %v533
    %v538 = vunpack.c.l.b16 %v534
    %v539 = vunpack.c.h.b16 %v533
    %v540 = vunpack.c.h.b16 %v534
    %v541 = vpack.c.b16 %v538, %v537
    %v542 = vpack.c.b16 %v540, %v539
    %545 = vst [vmem:[#allocation7] sm:$0xff] %v541
    %546 = vst [vmem:[#allocation7 + $0x8] sm:$0xff] %v542
    %v547 = vadd.f32 %v529, %v531
    %v548 = vadd.f32 %v530, %v532
    %549 = vst [vmem:[#allocation8] sm:$0xff] %v547
    %550 = vst [vmem:[#allocation8 + $0x8] sm:$0xff] %v548
    %v551 = vmul.f32 %v529, %v529
    %v552 = vmul.f32 %v530, %v530
    %v553 = vmul.f32 %v531, %v531
    %v554 = vmul.f32 %v532, %v532
    %v555 = vadd.f32 %v551, %v553
    %v556 = vadd.f32 %v552, %v554
    %557 = vst [vmem:[#allocation10] sm:$0xff] %v555
    %558 = vst [vmem:[#allocation10 + $0x8] sm:$0xff] %v556
    // Predicated region
    $region18: #{tpu_custom_call.1} parent=1 // pred_check
      _
    $region19: #{tpu_custom_call.1} parent=1 // pred_check_branch
      %560 = sbr.rel (0) target = $region21
    $region20: #{tpu_custom_call.1} parent=1 // pred_region
      %s562 = ssub.s32 256, 256
      %563 = vsyncadd [#allocation4], %s562
      %s564 = sshll.u32 [#allocation7], 4
      %s565 = int_to_ptr.vmem [resolvable:$true] %s564
      %570 = dma.vmem_to_hbm [thread:$0]  %s565, 256, %s2, [#allocation4], 128, 128, 8
    $region21: #{tpu_custom_call.1} parent=1 // pred_fallthru
      _
    // Predicated region
    $region22: #{tpu_custom_call.1} parent=1 // pred_check
      _
    $region23: #{tpu_custom_call.1} parent=1 // pred_check_branch
      %572 = sbr.rel (0) target = $region25
    $region24: #{tpu_custom_call.1} parent=1 // pred_region
      %s574 = ssub.s32 256, 256
      %575 = vsyncadd [#allocation9], %s574
      %s577 = sshll.u32 [#allocation8], 4
      %s578 = int_to_ptr.vmem [resolvable:$true] %s577
      %580 = dma.vmem_to_hbm [thread:$0]  %s578, 256, %s3, [#allocation9]
    $region25: #{tpu_custom_call.1} parent=1 // pred_fallthru
      _
    // Predicated region
    $region26: #{tpu_custom_call.1} parent=1 // pred_check
      _
    $region27: #{tpu_custom_call.1} parent=1 // pred_check_branch
      %582 = sbr.rel (0) target = $region29
    $region28: #{tpu_custom_call.1} parent=1 // pred_region
      %s584 = ssub.s32 256, 256
      %585 = vsyncadd [#allocation9], %s584
      %s587 = sshll.u32 [#allocation10], 4
      %s588 = int_to_ptr.vmem [resolvable:$true] %s587
      %590 = dma.vmem_to_hbm [thread:$0]  %s588, 256, %s4, [#allocation9]
    $region29: #{tpu_custom_call.1} parent=1 // pred_fallthru
      _
    // Predicated region
    $region30: #{tpu_custom_call.1} parent=1 // pred_check
      _
    $region31: #{tpu_custom_call.1} parent=1 // pred_check_branch
      %592 = sbr.rel (0) target = $region33
    $region32: #{tpu_custom_call.1} parent=1 // pred_region
      %593 = dma.done [#allocation4], 256
    $region33: #{tpu_custom_call.1} parent=1 // pred_fallthru
      _
    // Predicated region
    $region34: #{tpu_custom_call.1} parent=1 // pred_check
      _
    $region35: #{tpu_custom_call.1} parent=1 // pred_check_branch
      %595 = sbr.rel (0) target = $region37
    $region36: #{tpu_custom_call.1} parent=1 // pred_region
      %596 = dma.done [#allocation9], 256
    $region37: #{tpu_custom_call.1} parent=1 // pred_fallthru
      _
    // Predicated region
    $region38: #{tpu_custom_call.1} parent=1 // pred_check
      _
    $region39: #{tpu_custom_call.1} parent=1 // pred_check_branch
      %598 = sbr.rel (0) target = $region41
    $region40: #{tpu_custom_call.1} parent=1 // pred_region
      %599 = dma.done [#allocation9], 256
    $region41: #{tpu_custom_call.1} parent=1 // pred_fallthru
      _
    %600 = vsyncpa [#allocation3], 1
    %601 = vsyncpa [#allocation6], 1
    %602 = vsyncpa [#allocation4], 1
    %603 = vsyncpa [#allocation9], 1

</llo_original>
